<compile_context>
chip_gen: v7x
topology: tpu7x:2x2x1
jax: 0.10.0
libtpu: 0.0.40
codegen_flags: <defaults>
</compile_context>

<pallas_src>
import jax
import jax.numpy as jnp
from jax.experimental import pallas as pl
from jax.experimental.pallas import tpu as pltpu

BN_EPS = 1e-5


# --------------------------------------------------------------------------
# Kernel (BN already folded into w/b; hsigmoid = clip(z+3, 0, 6) / 6)
# --------------------------------------------------------------------------
def _se_kernel(x_ref, w1t_ref, b1_ref, w2t_ref, b2_ref, out_ref):
    """Batch block: x_ref / out_ref are (Nb, C, HW); HW on lanes.

    w1t: (C, Cr), b1: (1, Cr), w2t: (Cr, C), b2: (1, C) -- BN folded in.
    """
    x = x_ref[...]                                               # (Nb, C, HW), input dtype
    inv_hw = 1.0 / x_ref.shape[-1]
    # AdaptiveAvgPool2d(1): f32 accumulation without materializing an f32 copy.
    pooled = jnp.sum(x, axis=-1, dtype=jnp.float32) * inv_hw     # (Nb, C) f32
    # 1x1 conv + BN + ReLU  (Nb-row GEMM instead of a 1-wide matvec)
    y = jnp.dot(pooled, w1t_ref[...],
                preferred_element_type=jnp.float32) + b1_ref[...]   # (Nb, Cr)
    y = jnp.maximum(y, 0.0)
    # 1x1 conv + BN + hsigmoid
    z = jnp.dot(y, w2t_ref[...],
                preferred_element_type=jnp.float32) + b2_ref[...]   # (Nb, C)
    scale = jnp.clip(z + 3.0, 0.0, 6.0) * (1.0 / 6.0)               # hsigmoid, f32
    # Rescale in the input dtype; per-image scale broadcasts over HW (lanes).
    out_ref[...] = x * scale.astype(out_ref.dtype)[:, :, None]


# --------------------------------------------------------------------------
# Helpers
# --------------------------------------------------------------------------
def _pick_batch_block(n, c, hw, itemsize, target=8, block_budget_bytes=6 << 20):
    """Largest divisor of n that (a) keeps >= 2 grid steps when n >= 2 so both
    v7x TensorCores get work, (b) keeps the x block under a VMEM budget, and
    (c) does not exceed `target`."""
    cap = target
    if n >= 2:
        cap = min(cap, n // 2)
    cap = min(cap, max(1, block_budget_bytes // max(1, c * hw * itemsize)))
    cap = max(cap, 1)
    nb = 1
    for d in range(1, cap + 1):
        if n % d == 0:
            nb = d
    return nb


def _const_spec(shape):
    """BlockSpec for a grid-invariant (constant) operand; single-buffered."""
    idx = lambda n: (0,) * len(shape)
    try:
        return pl.BlockSpec(shape, idx, pipeline_mode=pl.Buffered(1))
    except (TypeError, AttributeError):
        # Older Pallas without pipeline_mode: fall back to default buffering.
        return pl.BlockSpec(shape, idx)


# --------------------------------------------------------------------------
# Wrapper
# --------------------------------------------------------------------------
def se_module(x, params, *, donate_x=False, batch_block=8):
    """x: (N, C, H, W), float32 or bfloat16. params: SE weights / BN stats."""
    N, C, H, W = x.shape
    HW = H * W
    Cr = params["w1"].shape[0]

    # ---- Fold eval-mode BN into the 1x1 convs (once, outside the grid) ----
    s1 = params["g1"] * jax.lax.rsqrt(params["v1"] + BN_EPS)            # (Cr,)
    w1t = (params["w1"] * s1[:, None]).T.astype(jnp.float32)            # (C, Cr)
    b1 = (params["b1"] - params["m1"] * s1).astype(jnp.float32).reshape(1, Cr)
    s2 = params["g2"] * jax.lax.rsqrt(params["v2"] + BN_EPS)            # (C,)
    w2t = (params["w2"] * s2[:, None]).T.astype(jnp.float32)            # (Cr, C)
    b2 = (params["b2"] - params["m2"] * s2).astype(jnp.float32).reshape(1, C)

    itemsize = jnp.dtype(x.dtype).itemsize
    Nb = _pick_batch_block(N, C, HW, itemsize, target=batch_block)
    grid_steps = N // Nb                                       # Nb divides N

    block_bytes = Nb * C * HW * itemsize
    w_bytes = (2 * C * Cr + Cr + C) * 4
    # in + out double-buffered, f32 headroom for reduction temporaries (bf16
    # inputs), single-buffered weights, plus compiler slack.
    needed = 4 * block_bytes + Nb * C * HW * 4 + w_bytes + (2 << 20)
    try:
        vmem_cap = int(pltpu.get_tpu_info().vmem_capacity_bytes)
    except Exception:
        vmem_cap = 64 << 20                                    # conservative (v7x-sized)
    vmem_limit = int(min(max(needed, 16 << 20), (vmem_cap * 3) // 4))

    compiler_params = pltpu.CompilerParams(
        dimension_semantics=("parallel",),      # batch blocks shard across megacore TCs
        vmem_limit_bytes=vmem_limit,
    )
    # Purely HBM-bandwidth-bound: one full read + one full write of x.
    cost = pl.CostEstimate(
        flops=int(N * (4 * C * Cr + 3 * C * HW)),
        transcendentals=0,
        bytes_accessed=int(2 * N * C * HW * itemsize + 2 * w_bytes),
    )
    aliases = {0: 0} if donate_x else {}

    x3 = x.reshape(N, C, HW)                    # contiguous flatten -> free
    # NOTE: if inbound DMA shows up exposed in a trace, sweep
    # pipeline_mode=pl.Buffered(3) on the x in_spec below.
    out3 = pl.pallas_call(
        _se_kernel,
        out_shape=jax.ShapeDtypeStruct((N, C, HW), x.dtype),
        grid_spec=pltpu.PrefetchScalarGridSpec(
            num_scalar_prefetch=0,
            grid=(grid_steps,),
            in_specs=[
                pl.BlockSpec((Nb, C, HW), lambda n: (n, 0, 0)),
                _const_spec((C, Cr)),           # folded W1^T
                _const_spec((1, Cr)),           # folded b1
                _const_spec((Cr, C)),           # folded W2^T
                _const_spec((1, C)),            # folded b2
            ],
            out_specs=pl.BlockSpec((Nb, C, HW), lambda n: (n, 0, 0)),
        ),
        compiler_params=compiler_params,
        cost_estimate=cost,
        input_output_aliases=aliases,
    )(x3, w1t, b1, w2t, b2)
    return out3.reshape(N, C, H, W)


# --------------------------------------------------------------------------
# Pure-JAX reference (unfolded BN) for correctness checking
# --------------------------------------------------------------------------
def se_module_ref(x, params):
    pooled = jnp.mean(x, axis=(2, 3))                                  # (N, C)
    y = pooled @ params["w1"].T                                        # (N, Cr)
    y = ((y - params["m1"]) * jax.lax.rsqrt(params["v1"] + BN_EPS)
         * params["g1"] + params["b1"])
    y = jnp.maximum(y, 0.0)
    z = y @ params["w2"].T                                             # (N, C)
    z = ((z - params["m2"]) * jax.lax.rsqrt(params["v2"] + BN_EPS)
         * params["g2"] + params["b2"])
    scale = jnp.clip(z + 3.0, 0.0, 6.0) / 6.0
    return x * scale[:, :, None, None]


def init_params(key, in_size, reduction=4):
    cr = in_size // reduction
    ks = jax.random.split(key, 10)
    return {
        # nn.Conv2d(in_size, cr, 1, bias=False): (cr, in_size, 1, 1) -> (cr, in_size)
        "w1": jax.random.normal(ks[0], (cr, in_size), jnp.float32) * 0.5,
        # nn.Conv2d(cr, in_size, 1, bias=False): (in_size, cr, 1, 1) -> (in_size, cr)
        "w2": jax.random.normal(ks[1], (in_size, cr), jnp.float32) * 0.5,
        # BatchNorm2d(cr): gamma, beta, running_mean, running_var
        "g1": 1.0 + 0.1 * jax.random.normal(ks[2], (cr,), jnp.float32),
        "b1": 0.1 * jax.random.normal(ks[3], (cr,), jnp.float32),
        "m1": 0.1 * jax.random.normal(ks[4], (cr,), jnp.float32),
        "v1": jax.random.uniform(ks[5], (cr,), jnp.float32, 0.5, 1.5),
        # BatchNorm2d(in_size)
        "g2": 1.0 + 0.1 * jax.random.normal(ks[6], (in_size,), jnp.float32),
        "b2": 0.1 * jax.random.normal(ks[7], (in_size,), jnp.float32),
        "m2": 0.1 * jax.random.normal(ks[8], (in_size,), jnp.float32),
        "v2": jax.random.uniform(ks[9], (in_size,), jnp.float32, 0.5, 1.5),
    }


if __name__ == "__main__":
    key = jax.random.PRNGKey(0)
    kx1, kx2, kp1, kp2 = jax.random.split(key, 4)

    # Case 1: lane-dense HW (16x16 = 256).  N=4 -> Nb=2, 2 parallel grid steps.
    N, C, H, W = 4, 16, 16, 16                  # in_size=16, reduction=4 -> Cr=4
    x = jax.random.normal(kx1, (N, C, H, W), jnp.float32)
    params = init_params(kp1, C, reduction=4)
    out = jax.block_until_ready(se_module(x, params))
    ref = se_module_ref(x, params)
    assert out.shape == x.shape and out.dtype == x.dtype
    assert jnp.allclose(out, ref, atol=2e-5, rtol=2e-5), "256-HW path mismatch"

    # Case 2: sub-128 HW (the 7x7 maps of MobileNetV3) -- same kernel, no transposes.
    N2, C2, H2, W2 = 4, 16, 7, 7
    x2 = jax.random.normal(kx2, (N2, C2, H2, W2), jnp.float32)
    params2 = init_params(kp2, C2, reduction=4)
    out2 = jax.block_until_ready(se_module(x2, params2))
    ref2 = se_module_ref(x2, params2)
    assert out2.shape == x2.shape and out2.dtype == x2.dtype
    assert jnp.allclose(out2, ref2, atol=2e-5, rtol=2e-5), "49-HW path mismatch"

    # Case 3: bf16 input (halves HBM traffic; f32 pooling/GEMM accumulation,
    # rescale performed in bf16).
    xb = x.astype(jnp.bfloat16)
    outb = jax.block_until_ready(se_module(xb, params))
    refb = se_module_ref(xb.astype(jnp.float32), params)
    assert outb.dtype == jnp.bfloat16
    assert jnp.allclose(outb.astype(jnp.float32), refb, atol=0.05, rtol=0.05), \
        "bf16 path mismatch"

    print("KERNEL_OK")
</pallas_src>

<mosaic_0001>
module attributes {stable_mosaic.version = 11 : i64} {
  func.func @_se_kernel(%arg0: i32, %arg1: memref<2x16x256xf32, #tpu.memory_space<vmem>>, %arg2: memref<16x4xf32, #tpu.memory_space<vmem>>, %arg3: memref<1x4xf32, #tpu.memory_space<vmem>>, %arg4: memref<4x16xf32, #tpu.memory_space<vmem>>, %arg5: memref<1x16xf32, #tpu.memory_space<vmem>>, %arg6: memref<2x16x256xf32, #tpu.memory_space<vmem>>) attributes {dimension_semantics = [#tpu.dimension_semantics<parallel>], iteration_bounds = array<i64: 2>, scalar_prefetch = 0 : i64, scratch_operands = 0 : i64, tpu.core_type = #tpu.core_type<tc>, window_params = [{transform_indices = @transform_0, window_bounds = array<i64: 2, 16, 256>}, {pipeline_mode = #tpu.pipeline_mode<synchronous>, transform_indices = @transform_1, window_bounds = array<i64: 16, 4>}, {pipeline_mode = #tpu.pipeline_mode<synchronous>, transform_indices = @transform_2, window_bounds = array<i64: 1, 4>}, {pipeline_mode = #tpu.pipeline_mode<synchronous>, transform_indices = @transform_3, window_bounds = array<i64: 4, 16>}, {pipeline_mode = #tpu.pipeline_mode<synchronous>, transform_indices = @transform_4, window_bounds = array<i64: 1, 16>}, {transform_indices = @transform_5, window_bounds = array<i64: 2, 16, 256>}]} {
    %c0 = arith.constant 0 : index
    %c0_0 = arith.constant 0 : index
    %c0_1 = arith.constant 0 : index
    %0 = vector.load %arg1[%c0, %c0_0, %c0_1] : memref<2x16x256xf32, #tpu.memory_space<vmem>>, vector<2x16x256xf32>
    %cst = arith.constant dense<0.000000e+00> : vector<2x16xf32>
    %1 = vector.multi_reduction <add>, %0, %cst [2] : vector<2x16x256xf32> to vector<2x16xf32>
    %cst_2 = arith.constant 3.906250e-03 : f32
    %2 = vector.broadcast %cst_2 : f32 to vector<2x16xf32>
    %3 = arith.mulf %1, %2 : vector<2x16xf32>
    %c0_3 = arith.constant 0 : index
    %c0_4 = arith.constant 0 : index
    %4 = vector.load %arg2[%c0_3, %c0_4] : memref<16x4xf32, #tpu.memory_space<vmem>>, vector<16x4xf32>
    %cst_5 = arith.constant dense<0.000000e+00> : vector<2x4xf32>
    %5 = tpu.matmul %3, %4, %cst_5 {dimension_numbers = #tpu.dot_dimension_numbers<[1], [0], [0], [1], [0, 0, 1, 1], [], []>} : vector<2x16xf32>, vector<16x4xf32>, vector<2x4xf32> -> vector<2x4xf32>
    %c0_6 = arith.constant 0 : index
    %c0_7 = arith.constant 0 : index
    %6 = vector.load %arg3[%c0_6, %c0_7] : memref<1x4xf32, #tpu.memory_space<vmem>>, vector<1x4xf32>
    %7 = vector.broadcast %6 : vector<1x4xf32> to vector<2x4xf32>
    %8 = arith.addf %5, %7 : vector<2x4xf32>
    %cst_8 = arith.constant 0.000000e+00 : f32
    %9 = vector.broadcast %cst_8 : f32 to vector<2x4xf32>
    %10 = arith.maximumf %8, %9 : vector<2x4xf32>
    %c0_9 = arith.constant 0 : index
    %c0_10 = arith.constant 0 : index
    %11 = vector.load %arg4[%c0_9, %c0_10] : memref<4x16xf32, #tpu.memory_space<vmem>>, vector<4x16xf32>
    %cst_11 = arith.constant dense<0.000000e+00> : vector<2x16xf32>
    %12 = tpu.matmul %10, %11, %cst_11 {dimension_numbers = #tpu.dot_dimension_numbers<[1], [0], [0], [1], [0, 0, 1, 1], [], []>} : vector<2x4xf32>, vector<4x16xf32>, vector<2x16xf32> -> vector<2x16xf32>
    %c0_12 = arith.constant 0 : index
    %c0_13 = arith.constant 0 : index
    %13 = vector.load %arg5[%c0_12, %c0_13] : memref<1x16xf32, #tpu.memory_space<vmem>>, vector<1x16xf32>
    %14 = vector.broadcast %13 : vector<1x16xf32> to vector<2x16xf32>
    %15 = arith.addf %12, %14 : vector<2x16xf32>
    %cst_14 = arith.constant 3.000000e+00 : f32
    %16 = vector.broadcast %cst_14 : f32 to vector<2x16xf32>
    %17 = arith.addf %15, %16 : vector<2x16xf32>
    %cst_15 = arith.constant 0.000000e+00 : f32
    %cst_16 = arith.constant 6.000000e+00 : f32
    %18 = vector.broadcast %cst_15 : f32 to vector<2x16xf32>
    %19 = arith.maximumf %18, %17 : vector<2x16xf32>
    %20 = vector.broadcast %cst_16 : f32 to vector<2x16xf32>
    %21 = arith.minimumf %20, %19 : vector<2x16xf32>
    %cst_17 = arith.constant 0.166666672 : f32
    %22 = vector.broadcast %cst_17 : f32 to vector<2x16xf32>
    %23 = arith.mulf %21, %22 : vector<2x16xf32>
    %24 = vector.shape_cast %23 : vector<2x16xf32> to vector<2x16x1xf32>
    %25 = vector.broadcast %24 : vector<2x16x1xf32> to vector<2x16x256xf32>
    %26 = arith.mulf %0, %25 : vector<2x16x256xf32>
    %c0_18 = arith.constant 0 : index
    %c0_19 = arith.constant 0 : index
    %c0_20 = arith.constant 0 : index
    %27 = vector.load %arg6[%c0_18, %c0_19, %c0_20] : memref<2x16x256xf32, #tpu.memory_space<vmem>>, vector<2x16x256xf32>
    tpu.vector_store %arg6[%c0_18, %c0_19, %c0_20], %26 {strides = array<i32>} : memref<2x16x256xf32, #tpu.memory_space<vmem>>, vector<2x16x256xf32>,
    return
  }
  func.func @transform_0(%arg0: i32) -> (i32, i32, i32) {
    %c0_i32 = arith.constant 0 : i32
    %c0_i32_0 = arith.constant 0 : i32
    %c0_i32_1 = arith.constant 0 : i32
    return %arg0, %c0_i32, %c0_i32_0 : i32, i32, i32
  }
  func.func @transform_1(%arg0: i32) -> (i32, i32) {
    %c0_i32 = arith.constant 0 : i32
    %c0_i32_0 = arith.constant 0 : i32
    %c0_i32_1 = arith.constant 0 : i32
    return %c0_i32, %c0_i32_0 : i32, i32
  }
  func.func @transform_2(%arg0: i32) -> (i32, i32) {
    %c0_i32 = arith.constant 0 : i32
    %c0_i32_0 = arith.constant 0 : i32
    %c0_i32_1 = arith.constant 0 : i32
    return %c0_i32, %c0_i32_0 : i32, i32
  }
  func.func @transform_3(%arg0: i32) -> (i32, i32) {
    %c0_i32 = arith.constant 0 : i32
    %c0_i32_0 = arith.constant 0 : i32
    %c0_i32_1 = arith.constant 0 : i32
    return %c0_i32, %c0_i32_0 : i32, i32
  }
  func.func @transform_4(%arg0: i32) -> (i32, i32) {
    %c0_i32 = arith.constant 0 : i32
    %c0_i32_0 = arith.constant 0 : i32
    %c0_i32_1 = arith.constant 0 : i32
    return %c0_i32, %c0_i32_0 : i32, i32
  }
  func.func @transform_5(%arg0: i32) -> (i32, i32, i32) {
    %c0_i32 = arith.constant 0 : i32
    %c0_i32_0 = arith.constant 0 : i32
    %c0_i32_1 = arith.constant 0 : i32
    return %arg0, %c0_i32, %c0_i32_0 : i32, i32, i32
  }
}

</mosaic_0001>

<llo_original>
// kernel: tpu_custom_call.1
$region0: #{tpu_custom_call.1}
  #allocation0 [shape = 'u32[]', space=smem, size = 0x4, offset = 0x4, fixed_abs, tag = 'smem constant byte address 0x4 - core index']
  #allocation1 [shape = 'u32[144,128]{1,0:T(1,128)}', space=vmem, size = 0x12000, scoped, tag = 'internal scratch']
  %s0 = inlined_call_operand.hbm [shape: f32[4,16,256], index: 0, kind: input, shape index: {}]
  %s1 = inlined_call_operand.vmem [shape: f32[16,4], index: 1, kind: input, shape index: {}]
  %s2 = inlined_call_operand.vmem [shape: f32[1,4], index: 2, kind: input, shape index: {}]
  %s3 = inlined_call_operand.vmem [shape: f32[4,16], index: 3, kind: input, shape index: {}]
  %s4 = inlined_call_operand.vmem [shape: f32[1,16], index: 4, kind: input, shape index: {}]
  %s5 = inlined_call_operand.hbm [shape: f32[4,16,256], index: 5, kind: output, shape index: {}]
  %s6 = sld [smem:[#allocation0]]
  $region57: #{tpu_custom_call.1} parent=0
    _
  %s8 = ssub.s32 1, %s6
  %s9 = scalar_select 0, %s8, %s6
  $region1: #{tpu_custom_call.1} parent=0
    #allocation2 [shape = 'u8[65536]{0}', space=vmem, size = 0x10000, scoped, tag = 'input window, operand 0']
    #allocation3 [shape = 's32[2]{0}', space=sflag, size = 0x8, scoped, tag = 'scoped memory for tpu_custom_call.1']
    #allocation4 [shape = 's32[2]{0}', space=sflag, size = 0x8, scoped, tag = 'scoped memory for tpu_custom_call.1']
    #allocation5 [shape = 'u8[65536]{0}', space=vmem, size = 0x10000, scoped, tag = 'output window, operand 0']
    %10 = vsyncpa [#allocation3], 0
    %s11 = scalar_lea.sflag [#allocation3], 1
    %12 = vsyncpa %s11, 0
    %13 = vsyncpa [#allocation4], 0
    %s14 = scalar_lea.sflag [#allocation4], 1
    %15 = vsyncpa %s14, 0
    loop: start=0, step=1, limit=4
    $region2: #{tpu_custom_call.1} parent=1 // loop_pre_header
      _
    $region3: #{tpu_custom_call.1} parent=1 // loop_header
      %s17 = sphi 0, %s21
      %p18 = scmp.ge.s32.totalorder %s17, 4
      %s27 = sphi 0, %s29
      %s30 = sphi 0, %s27
      %s31 = sphi 0, %s30
      %s47 = sphi 0, %s31
      %s51 = sphi 0, %s51
      %s53 = sphi 0, %s51
      %s54 = sphi 0, %s53
      %s68 = sphi 0, %s54
      %s72 = sphi 0, %s72
      %s74 = sphi 0, %s72
      %s75 = sphi 0, %s74
      %s89 = sphi 0, %s75
      %s93 = sphi 0, %s93
      %s95 = sphi 0, %s93
      %s96 = sphi 0, %s95
      %s110 = sphi 0, %s96
      %s114 = sphi 0, %s114
      %s116 = sphi 0, %s114
      %s117 = sphi 0, %s116
      %s131 = sphi 0, %s117
      %s137 = sphi 0, %s139
      %s140 = sphi 0, %s137
      %s141 = sphi 0, %s140
      %s157 = sphi 0, %s141
    $region4: #{tpu_custom_call.1} parent=1 // loop_header_branch
      %20 = sbr.rel (%p18) target = $region8
    $region5: #{tpu_custom_call.1} parent=1 // loop_body
      %s22 = ssub.s32 %s17, 1
      %s23 = ssub.s32 %s17, 2
      %s24 = sadd.s32 %s17, 1
      %s25 = ssub.s32 %s17, %s24
      %p26 = scmp.eq.s32.totalorder %s25, 0
      %s28 = sadd.s32 %s27, 1
      %s29 = scalar_select %p26, %s27, %s28
      %p32 = pneg %p26
      %p33 = scmp.eq.s32.totalorder %s17, 1
      %p34 = por %p32, %p33
      %p35 = scmp.ne.s32.totalorder %s27, %s30
      %p36 = scmp.eq.s32.totalorder %s17, 0
      %p37 = por %p35, %p36
      %p38 = scmp.ne.s32.totalorder %s27, %s30
      %p39 = scmp.eq.s32.totalorder %s22, 1
      %p40 = por %p38, %p39
      %p41 = scmp.ne.s32.totalorder %s30, %s31
      %p42 = scmp.eq.s32.totalorder %s22, 0
      %p43 = por %p41, %p42
      %p44 = scmp.ne.s32.totalorder %s30, %s31
      %p45 = scmp.eq.s32.totalorder %s23, 1
      %p46 = por %p44, %p45
      %p48 = scmp.ne.s32.totalorder %s31, %s47
      %p49 = scmp.eq.s32.totalorder %s23, 0
      %p50 = por %p48, %p49
      %s52 = sadd.s32 %s51, 1
      %p55 = scmp.eq.s32.totalorder %s17, 1
      %p56 = scmp.ne.s32.totalorder %s51, %s53
      %p57 = scmp.eq.s32.totalorder %s17, 0
      %p58 = por %p56, %p57
      %p59 = scmp.ne.s32.totalorder %s51, %s53
      %p60 = scmp.eq.s32.totalorder %s22, 1
      %p61 = por %p59, %p60
      %p62 = scmp.ne.s32.totalorder %s53, %s54
      %p63 = scmp.eq.s32.totalorder %s22, 0
      %p64 = por %p62, %p63
      %p65 = scmp.ne.s32.totalorder %s53, %s54
      %p66 = scmp.eq.s32.totalorder %s23, 1
      %p67 = por %p65, %p66
      %p69 = scmp.ne.s32.totalorder %s54, %s68
      %p70 = scmp.eq.s32.totalorder %s23, 0
      %p71 = por %p69, %p70
      %s73 = sadd.s32 %s72, 1
      %p76 = scmp.eq.s32.totalorder %s17, 1
      %p77 = scmp.ne.s32.totalorder %s72, %s74
      %p78 = scmp.eq.s32.totalorder %s17, 0
      %p79 = por %p77, %p78
      %p80 = scmp.ne.s32.totalorder %s72, %s74
      %p81 = scmp.eq.s32.totalorder %s22, 1
      %p82 = por %p80, %p81
      %p83 = scmp.ne.s32.totalorder %s74, %s75
      %p84 = scmp.eq.s32.totalorder %s22, 0
      %p85 = por %p83, %p84
      %p86 = scmp.ne.s32.totalorder %s74, %s75
      %p87 = scmp.eq.s32.totalorder %s23, 1
      %p88 = por %p86, %p87
      %p90 = scmp.ne.s32.totalorder %s75, %s89
      %p91 = scmp.eq.s32.totalorder %s23, 0
      %p92 = por %p90, %p91
      %s94 = sadd.s32 %s93, 1
      %p97 = scmp.eq.s32.totalorder %s17, 1
      %p98 = scmp.ne.s32.totalorder %s93, %s95
      %p99 = scmp.eq.s32.totalorder %s17, 0
      %p100 = por %p98, %p99
      %p101 = scmp.ne.s32.totalorder %s93, %s95
      %p102 = scmp.eq.s32.totalorder %s22, 1
      %p103 = por %p101, %p102
      %p104 = scmp.ne.s32.totalorder %s95, %s96
      %p105 = scmp.eq.s32.totalorder %s22, 0
      %p106 = por %p104, %p105
      %p107 = scmp.ne.s32.totalorder %s95, %s96
      %p108 = scmp.eq.s32.totalorder %s23, 1
      %p109 = por %p107, %p108
      %p111 = scmp.ne.s32.totalorder %s96, %s110
      %p112 = scmp.eq.s32.totalorder %s23, 0
      %p113 = por %p111, %p112
      %s115 = sadd.s32 %s114, 1
      %p118 = scmp.eq.s32.totalorder %s17, 1
      %p119 = scmp.ne.s32.totalorder %s114, %s116
      %p120 = scmp.eq.s32.totalorder %s17, 0
      %p121 = por %p119, %p120
      %p122 = scmp.ne.s32.totalorder %s114, %s116
      %p123 = scmp.eq.s32.totalorder %s22, 1
      %p124 = por %p122, %p123
      %p125 = scmp.ne.s32.totalorder %s116, %s117
      %p126 = scmp.eq.s32.totalorder %s22, 0
      %p127 = por %p125, %p126
      %p128 = scmp.ne.s32.totalorder %s116, %s117
      %p129 = scmp.eq.s32.totalorder %s23, 1
      %p130 = por %p128, %p129
      %p132 = scmp.ne.s32.totalorder %s117, %s131
      %p133 = scmp.eq.s32.totalorder %s23, 0
      %p134 = por %p132, %p133
      %s135 = ssub.s32 %s17, %s24
      %p136 = scmp.eq.s32.totalorder %s135, 0
      %s138 = sadd.s32 %s137, 1
      %s139 = scalar_select %p136, %s137, %s138
      %p142 = pneg %p136
      %p143 = scmp.eq.s32.totalorder %s17, 1
      %p144 = por %p142, %p143
      %p145 = scmp.ne.s32.totalorder %s137, %s140
      %p146 = scmp.eq.s32.totalorder %s17, 0
      %p147 = por %p145, %p146
      %p148 = scmp.ne.s32.totalorder %s137, %s140
      %p149 = scmp.eq.s32.totalorder %s22, 1
      %p150 = por %p148, %p149
      %p151 = scmp.ne.s32.totalorder %s140, %s141
      %p152 = scmp.eq.s32.totalorder %s22, 0
      %p153 = por %p151, %p152
      %p154 = scmp.ne.s32.totalorder %s140, %s141
      %p155 = scmp.eq.s32.totalorder %s23, 1
      %p156 = por %p154, %p155
      %p158 = scmp.ne.s32.totalorder %s141, %s157
      %p159 = scmp.eq.s32.totalorder %s23, 0
      %p160 = por %p158, %p159
      %p161 = scmp.le.s32.totalorder 1, %s17
      %p162 = scmp.lt.s32.totalorder %s17, 3
      %p163 = pnand %p161, %p162
      %p164 = pneg %p163
      // Predicated region
      $region9: #{tpu_custom_call.1} parent=5 // pred_check
        _
      $region10: #{tpu_custom_call.1} parent=5 // pred_check_branch
        %166 = sbr.rel (%p163) target = $region12
      $region11: #{tpu_custom_call.1} parent=5 // pred_region
        %s167 = ssub.s32 %s17, 1
        // Predicated region
        $region13: #{tpu_custom_call.1} parent=11 // pred_check
          %p168 = pneg %p64
        $region14: #{tpu_custom_call.1} parent=11 // pred_check_branch
          %170 = sbr.rel (%p168) target = $region16
        $region15: #{tpu_custom_call.1} parent=11 // pred_region
          _
        $region16: #{tpu_custom_call.1} parent=11 // pred_fallthru
          _
        // Predicated region
        $region17: #{tpu_custom_call.1} parent=11 // pred_check
          %p171 = pneg %p85
        $region18: #{tpu_custom_call.1} parent=11 // pred_check_branch
          %173 = sbr.rel (%p171) target = $region20
        $region19: #{tpu_custom_call.1} parent=11 // pred_region
          _
        $region20: #{tpu_custom_call.1} parent=11 // pred_fallthru
          _
        // Predicated region
        $region21: #{tpu_custom_call.1} parent=11 // pred_check
          %p174 = pneg %p106
        $region22: #{tpu_custom_call.1} parent=11 // pred_check_branch
          %176 = sbr.rel (%p174) target = $region24
        $region23: #{tpu_custom_call.1} parent=11 // pred_region
          _
        $region24: #{tpu_custom_call.1} parent=11 // pred_fallthru
          _
        // Predicated region
        $region25: #{tpu_custom_call.1} parent=11 // pred_check
          %p177 = pneg %p127
        $region26: #{tpu_custom_call.1} parent=11 // pred_check_branch
          %179 = sbr.rel (%p177) target = $region28
        $region27: #{tpu_custom_call.1} parent=11 // pred_region
          _
        $region28: #{tpu_custom_call.1} parent=11 // pred_fallthru
          _
      $region12: #{tpu_custom_call.1} parent=5 // pred_fallthru
        _
      %p180 = scmp.lt.s32.totalorder %s17, 2
      // Predicated region
      $region29: #{tpu_custom_call.1} parent=5 // pred_check
        %p181 = pneg %p180
      $region30: #{tpu_custom_call.1} parent=5 // pred_check_branch
        %183 = sbr.rel (%p181) target = $region32
      $region31: #{tpu_custom_call.1} parent=5 // pred_region
        // Predicated region
        $region33: #{tpu_custom_call.1} parent=31 // pred_check
          %p184 = pneg %p37
        $region34: #{tpu_custom_call.1} parent=31 // pred_check_branch
          %186 = sbr.rel (%p184) target = $region36
        $region35: #{tpu_custom_call.1} parent=31 // pred_region
          %s187 = sand.u32 %s27, 1
          %s188 = scalar_lea.sflag [#allocation3], %s187
          %s189 = sand.u32 %s27, 1
          %s190 = smul.addr %s189, 64
          %s191 = scalar_lea.vmem [#allocation2], %s190
          %s192 = smul.u32 2, %s17
          %s194 = ssub.s32 1024, 1024
          %195 = vsyncadd %s188, %s194
          %s196 = smul.addr %s192, 4
          %s197 = smul.addr %s196, 128
          %s198 = scalar_lea.hbm %s0, %s197
          %s199 = sshll.u32 %s191, 4
          %s200 = int_to_ptr.vmem [resolvable:$true] %s199
          %205 = dma.hbm_to_vmem [thread:$0]  %s198, 1024, %s200, %s188, 256, 256, 16
        $region36: #{tpu_custom_call.1} parent=31 // pred_fallthru
          _
      $region32: #{tpu_custom_call.1} parent=5 // pred_fallthru
        _
      %p206 = scmp.le.s32.totalorder 1, %s17
      %p207 = scmp.lt.s32.totalorder %s17, 3
      %p208 = pnand %p206, %p207
      %p209 = pneg %p208
      // Predicated region
      $region37: #{tpu_custom_call.1} parent=5 // pred_check
        _
      $region38: #{tpu_custom_call.1} parent=5 // pred_check_branch
        %211 = sbr.rel (%p208) target = $region40
      $region39: #{tpu_custom_call.1} parent=5 // pred_region
        %s212 = ssub.s32 %s17, 1
        %s213 = sand.u32 %s30, 1
        %s214 = scalar_lea.sflag [#allocation3], %s213
        %s215 = sand.u32 %s30, 1
        %s216 = smul.addr %s215, 64
        %s217 = scalar_lea.vmem [#allocation2], %s216
        // Predicated region
        $region41: #{tpu_custom_call.1} parent=39 // pred_check
          %p218 = pneg %p43
        $region42: #{tpu_custom_call.1} parent=39 // pred_check_branch
          %220 = sbr.rel (%p218) target = $region44
        $region43: #{tpu_custom_call.1} parent=39 // pred_region
          %221 = dma.done %s214, 1024
        $region44: #{tpu_custom_call.1} parent=39 // pred_fallthru
          _
        %s222 = sand.u32 %s30, 1
        %s223 = scalar_lea.sflag [#allocation3], %s222
        %s224 = sand.u32 %s30, 1
        %s225 = smul.addr %s224, 64
        %s226 = scalar_lea.vmem [#allocation2], %s225
        %p227 = pneg %p43
        %p228 = pneg %p40
        %p229 = pneg %p64
        %p230 = pneg %p61
        %p231 = pneg %p85
        %p232 = pneg %p82
        %p233 = pneg %p106
        %p234 = pneg %p103
        %p235 = pneg %p127
        %p236 = pneg %p124
        %p237 = pneg %p153
        %p238 = pneg %p150
        %s239 = sand.u32 %s140, 1
        %s240 = scalar_lea.sflag [#allocation4], %s239
        %s241 = sand.u32 %s140, 1
        %s242 = smul.addr %s241, 64
        %s243 = scalar_lea.vmem [#allocation5], %s242
        %s244 = smul.u32 2, %s22
        %s245 = smul.u32 2, %s22
        %v246 = vld [vmem:[%s217] sm:$0xff]
        %v247 = vld [vmem:[%s217 + $0x8] sm:$0xff]
        %v248 = vld [vmem:[%s217 + $0x10] sm:$0xff]
        %v249 = vld [vmem:[%s217 + $0x18] sm:$0xff]
        %v250 = vld [vmem:[%s217 + $0x20] sm:$0xff]
        %v251 = vld [vmem:[%s217 + $0x28] sm:$0xff]
        %v252 = vld [vmem:[%s217 + $0x30] sm:$0xff]
        %v253 = vld [vmem:[%s217 + $0x38] sm:$0xff]
        %v254 = vadd.f32 %v246, %v247
        %255 = vadd.xlane.f32.xlu0 %v254
        %v256 = vpop.xlane.xlu0 %255
        %v257 = vadd.f32 %v248, %v249
        %258 = vadd.xlane.f32.xlu0 %v257
        %v259 = vpop.xlane.xlu0 %258
        %v260 = vadd.f32 %v250, %v251
        %261 = vadd.xlane.f32.xlu0 %v260
        %v262 = vpop.xlane.xlu0 %261
        %v263 = vadd.f32 %v252, %v253
        %264 = vadd.xlane.f32.xlu0 %v263
        %v265 = vpop.xlane.xlu0 %264
        %v266 = vmul.f32 %v256, 0.00390625
        %v267 = vmul.f32 %v259, 0.00390625
        %v268 = vmul.f32 %v262, 0.00390625
        %v269 = vmul.f32 %v265, 0.00390625
        %v270 = vld [vmem:[%s1] sm:$0xff]
        %v271 = vld [vmem:[%s1 + $0x8] sm:$0xff]
        %v272 = vld [vmem:[%s2] sm:$0x1]
        %v274 = vlaneseq
        %v275 = vshrl.u32 %v274, 7
        %v276 = vsub.s32 0, %v275
        %v277 = vrot.slane %v272, %v276
        %v283 = vlaneseq
        %v284 = vand.u32 %v283, 127
        %v285 = vlaneseq
        %v286 = vshrl.u32 %v285, 7
        %v287 = vsub.s32 %v284, %v286
        %v288 = vrot.slane %v266, %v287
        %v289 = vadd.s32 %v284, 4294967288
        %v290 = vlaneseq
        %v291 = vshrl.u32 %v290, 7
        %v292 = vsub.s32 %v289, %v291
        %v293 = vrot.slane %v267, %v292
        %vm294 = vcmask 130112
        %v295 = vsel %vm294, %v293, %v288
        %v296 = vlaneseq
        %v297 = vshrl.u32 %v296, 7
        %v298 = vsub.s32 %v284, %v297
        %v299 = vrot.slane %v268, %v298
        %v300 = vlaneseq
        %v301 = vshrl.u32 %v300, 7
        %v302 = vsub.s32 %v289, %v301
        %v303 = vrot.slane %v269, %v302
        %v304 = vsel %vm294, %v303, %v299
        %vm305 = vcmask 1041409
        %v306 = vsel %vm305, %v304, %v295
        %vm307 = vcmask 130048
        %v308 = vsel %vm307, %v306, 0
        %310 = vmatprep.subr.mxu0 0.0
        %311 = vmatpush1.msra.mxu0 %v270
        %312 = vmatprep.subr.mxu0 0.0
        %313 = vmatpush1.msra.mxu0 %v271
        %314 = vmatprep.subr.mxu0 0.0
        %315 = vmatpush1.msra.mxu0 0.0
        %316 = vmatprep.subr.mxu0 0.0
        %317 = vmatpush1.msra.mxu0 0.0
        %318 = vmatprep.subr.mxu0 0.0
        %319 = vmatpush1.msra.mxu0 0.0
        %320 = vmatprep.subr.mxu0 0.0
        %321 = vmatpush1.msra.mxu0 0.0
        %322 = vmatprep.subr.mxu0 0.0
        %323 = vmatpush1.msra.mxu0 0.0
        %324 = vmatprep.subr.mxu0 0.0
        %325 = vmatpush1.msra.mxu0 0.0
        %326 = vmatprep.subr.mxu0 0.0
        %327 = vmatpush1.msra.mxu0 0.0
        %328 = vmatprep.subr.mxu0 0.0
        %329 = vmatpush1.msra.mxu0 0.0
        %330 = vmatprep.subr.mxu0 0.0
        %331 = vmatpush1.msra.mxu0 0.0
        %332 = vmatprep.subr.mxu0 0.0
        %333 = vmatpush1.msra.mxu0 0.0
        %334 = vmatprep.subr.mxu0 0.0
        %335 = vmatpush1.msra.mxu0 0.0
        %336 = vmatprep.subr.mxu0 0.0
        %337 = vmatpush1.msra.mxu0 0.0
        %338 = vmatprep.subr.mxu0 0.0
        %339 = vmatpush1.msra.mxu0 0.0
        %340 = vmatprep.subr.mxu0 0.0
        %341 = vmatpush1.msra.mxu0 0.0
        %342 = vmatprep.subr.mxu0 0.0
        %343 = vmatpush1.msra.mxu0 0.0
        %344 = vmatprep.subr.mxu0 0.0
        %345 = vmatpush1.msra.mxu0 0.0
        %346 = vmatprep.subr.mxu0 0.0
        %347 = vmatpush1.msra.mxu0 0.0
        %348 = vmatprep.subr.mxu0 0.0
        %349 = vmatpush1.msra.mxu0 0.0
        %350 = vmatprep.subr.mxu0 0.0
        %351 = vmatpush1.msra.mxu0 0.0
        %352 = vmatprep.subr.mxu0 0.0
        %353 = vmatpush1.msra.mxu0 0.0
        %354 = vmatprep.subr.mxu0 0.0
        %355 = vmatpush1.msra.mxu0 0.0
        %356 = vmatprep.subr.mxu0 0.0
        %357 = vmatpush1.msra.mxu0 0.0
        %358 = vmatprep.subr.mxu0 0.0
        %359 = vmatpush1.msra.mxu0 0.0
        %360 = vmatprep.subr.mxu0 0.0
        %361 = vmatpush1.msra.mxu0 0.0
        %362 = vmatprep.subr.mxu0 0.0
        %363 = vmatpush1.msra.mxu0 0.0
        %364 = vmatprep.subr.mxu0 0.0
        %365 = vmatpush1.msra.mxu0 0.0
        %366 = vmatprep.subr.mxu0 0.0
        %367 = vmatpush1.msra.mxu0 0.0
        %368 = vmatprep.subr.mxu0 0.0
        %369 = vmatpush1.msra.mxu0 0.0
        %370 = vmatprep.subr.mxu0 0.0
        %371 = vmatpush1.msra.mxu0 0.0
        %372 = vmatprep.subr.mxu0 0.0
        %373 = vmatpush1.msra.mxu0 0.0
        %374 = vmatprep.mubr.f32.mxu0 0.0
        %375 = vmatmul.mubr.f32.gmra.mrb[0].mxu0 %v308
        %v376 = vpop.f32.mrb[0].mxu0
        %v377 = vadd.f32 %v277, %v376
        %v378 = vpop.f32.mrb[0].mxu0
        %379 = vdwg.mxu0
        %v380 = vmax.f32 %v377, 0.0
        %v381 = vld [vmem:[%s3] sm:$0xf]
        %v382 = vld [vmem:[%s4] sm:$0x1]
        %v384 = vlaneseq
        %v385 = vshrl.u32 %v384, 7
        %v386 = vsub.s32 0, %v385
        %v387 = vrot.slane %v382, %v386
        %vm389 = vcmask 31744
        %v391 = vsel %vm389, %v380, 0
        %vm393 = vcmask 1043456
        %v395 = vsel %vm393, %v381, 0
        %397 = vmatprep.subr.mxu0 0.0
        %398 = vmatpush1.msra.mxu0 %v395
        %399 = vmatprep.subr.mxu0 0.0
        %400 = vmatpush1.msra.mxu0 0.0
        %401 = vmatprep.subr.mxu0 0.0
        %402 = vmatpush1.msra.mxu0 0.0
        %403 = vmatprep.subr.mxu0 0.0
        %404 = vmatpush1.msra.mxu0 0.0
        %405 = vmatprep.subr.mxu0 0.0
        %406 = vmatpush1.msra.mxu0 0.0
        %407 = vmatprep.subr.mxu0 0.0
        %408 = vmatpush1.msra.mxu0 0.0
        %409 = vmatprep.subr.mxu0 0.0
        %410 = vmatpush1.msra.mxu0 0.0
        %411 = vmatprep.subr.mxu0 0.0
        %412 = vmatpush1.msra.mxu0 0.0
        %413 = vmatprep.subr.mxu0 0.0
        %414 = vmatpush1.msra.mxu0 0.0
        %415 = vmatprep.subr.mxu0 0.0
        %416 = vmatpush1.msra.mxu0 0.0
        %417 = vmatprep.subr.mxu0 0.0
        %418 = vmatpush1.msra.mxu0 0.0
        %419 = vmatprep.subr.mxu0 0.0
        %420 = vmatpush1.msra.mxu0 0.0
        %421 = vmatprep.subr.mxu0 0.0
        %422 = vmatpush1.msra.mxu0 0.0
        %423 = vmatprep.subr.mxu0 0.0
        %424 = vmatpush1.msra.mxu0 0.0
        %425 = vmatprep.subr.mxu0 0.0
        %426 = vmatpush1.msra.mxu0 0.0
        %427 = vmatprep.subr.mxu0 0.0
        %428 = vmatpush1.msra.mxu0 0.0
        %429 = vmatprep.subr.mxu0 0.0
        %430 = vmatpush1.msra.mxu0 0.0
        %431 = vmatprep.subr.mxu0 0.0
        %432 = vmatpush1.msra.mxu0 0.0
        %433 = vmatprep.subr.mxu0 0.0
        %434 = vmatpush1.msra.mxu0 0.0
        %435 = vmatprep.subr.mxu0 0.0
        %436 = vmatpush1.msra.mxu0 0.0
        %437 = vmatprep.subr.mxu0 0.0
        %438 = vmatpush1.msra.mxu0 0.0
        %439 = vmatprep.subr.mxu0 0.0
        %440 = vmatpush1.msra.mxu0 0.0
        %441 = vmatprep.subr.mxu0 0.0
        %442 = vmatpush1.msra.mxu0 0.0
        %443 = vmatprep.subr.mxu0 0.0
        %444 = vmatpush1.msra.mxu0 0.0
        %445 = vmatprep.subr.mxu0 0.0
        %446 = vmatpush1.msra.mxu0 0.0
        %447 = vmatprep.subr.mxu0 0.0
        %448 = vmatpush1.msra.mxu0 0.0
        %449 = vmatprep.subr.mxu0 0.0
        %450 = vmatpush1.msra.mxu0 0.0
        %451 = vmatprep.subr.mxu0 0.0
        %452 = vmatpush1.msra.mxu0 0.0
        %453 = vmatprep.subr.mxu0 0.0
        %454 = vmatpush1.msra.mxu0 0.0
        %455 = vmatprep.subr.mxu0 0.0
        %456 = vmatpush1.msra.mxu0 0.0
        %457 = vmatprep.subr.mxu0 0.0
        %458 = vmatpush1.msra.mxu0 0.0
        %459 = vmatprep.subr.mxu0 0.0
        %460 = vmatpush1.msra.mxu0 0.0
        %461 = vmatprep.mubr.f32.mxu0 0.0
        %462 = vmatmul.mubr.f32.gmra.mrb[0].mxu0 %v391
        %v463 = vpop.f32.mrb[0].mxu0
        %v464 = vadd.f32 %v387, %v463
        %v465 = vpop.f32.mrb[0].mxu0
        %466 = vdwg.mxu0
        %v467 = vadd.f32 %v464, 3.0
        %v468 = vmax.f32 %v467, 0.0
        %v469 = vmin.f32 %v468, 6.0
        %v470 = vmul.f32 %v469, 0.16666667
        %v471 = vlaneseq
        %v472 = vshrl.u32 %v471, 7
        %v473 = vsub.s32 0, %v472
        %v474 = vrot.slane %v470, %v473
        %476 = vbcast.lane.b32.xlu0 %v474, 256
        %v477 = vpop.permute.xlu0 %476
        %s479 = sor.u32 256, 8
        %480 = vbcast.lane.b32.xlu0 %v474, %s479
        %v481 = vpop.permute.xlu0 %480
        %v482 = vlaneseq
        %v483 = vshrl.u32 %v482, 7
        %v484 = vsub.s32 1, %v483
        %v485 = vrot.slane %v470, %v484
        %487 = vbcast.lane.b32.xlu0 %v485, 256
        %v488 = vpop.permute.xlu0 %487
        %s490 = sor.u32 256, 8
        %491 = vbcast.lane.b32.xlu0 %v485, %s490
        %v492 = vpop.permute.xlu0 %491
        %v493 = vmul.f32 %v246, %v477
        %v494 = vmul.f32 %v247, %v477
        %v495 = vmul.f32 %v248, %v481
        %v496 = vmul.f32 %v249, %v481
        %v497 = vmul.f32 %v250, %v488
        %v498 = vmul.f32 %v251, %v488
        %v499 = vmul.f32 %v252, %v492
        %v500 = vmul.f32 %v253, %v492
        %501 = vst [vmem:[%s243] sm:$0xff] %v493
        %502 = vst [vmem:[%s243 + $0x8] sm:$0xff] %v494
        %503 = vst [vmem:[%s243 + $0x10] sm:$0xff] %v495
        %504 = vst [vmem:[%s243 + $0x18] sm:$0xff] %v496
        %505 = vst [vmem:[%s243 + $0x20] sm:$0xff] %v497
        %506 = vst [vmem:[%s243 + $0x28] sm:$0xff] %v498
        %507 = vst [vmem:[%s243 + $0x30] sm:$0xff] %v499
        %508 = vst [vmem:[%s243 + $0x38] sm:$0xff] %v500
        %s509 = sand.u32 %s140, 1
        %s510 = scalar_lea.sflag [#allocation4], %s509
        %s511 = sand.u32 %s140, 1
        %s512 = smul.addr %s511, 64
        %s513 = scalar_lea.vmem [#allocation5], %s512
        // Predicated region
        $region45: #{tpu_custom_call.1} parent=39 // pred_check
          %p514 = pneg %p150
        $region46: #{tpu_custom_call.1} parent=39 // pred_check_branch
          %516 = sbr.rel (%p514) target = $region48
        $region47: #{tpu_custom_call.1} parent=39 // pred_region
          %s517 = smul.u32 2, %s22
          %s519 = ssub.s32 1024, 1024
          %520 = vsyncadd %s510, %s519
          %s521 = smul.addr %s517, 4
          %s522 = smul.addr %s521, 128
          %s523 = scalar_lea.hbm %s5, %s522
          %s524 = sshll.u32 %s513, 4
          %s525 = int_to_ptr.vmem [resolvable:$true] %s524
          %530 = dma.vmem_to_hbm [thread:$0]  %s525, 1024, %s523, %s510, 256, 256, 16
        $region48: #{tpu_custom_call.1} parent=39 // pred_fallthru
          _
      $region40: #{tpu_custom_call.1} parent=5 // pred_fallthru
        _
      %p531 = scmp.le.s32.totalorder 2, %s17
      // Predicated region
      $region49: #{tpu_custom_call.1} parent=5 // pred_check
        %p532 = pneg %p531
      $region50: #{tpu_custom_call.1} parent=5 // pred_check_branch
        %534 = sbr.rel (%p532) target = $region52
      $region51: #{tpu_custom_call.1} parent=5 // pred_region
        %s535 = ssub.s32 %s17, 2
        // Predicated region
        $region53: #{tpu_custom_call.1} parent=51 // pred_check
          %p536 = pneg %p156
        $region54: #{tpu_custom_call.1} parent=51 // pred_check_branch
          %538 = sbr.rel (%p536) target = $region56
        $region55: #{tpu_custom_call.1} parent=51 // pred_region
          %s539 = sand.u32 %s141, 1
          %s540 = scalar_lea.sflag [#allocation4], %s539
          %s541 = sand.u32 %s141, 1
          %s542 = smul.addr %s541, 64
          %s543 = scalar_lea.vmem [#allocation5], %s542
          %544 = dma.done %s540, 1024
        $region56: #{tpu_custom_call.1} parent=51 // pred_fallthru
          _
      $region52: #{tpu_custom_call.1} parent=5 // pred_fallthru
        _
    $region6: #{tpu_custom_call.1} parent=1 // loop_footer
      %s21 = sadd.s32 1, %s17
    $region7: #{tpu_custom_call.1} parent=1 // loop_footer_branch
      %16 = sbr.rel target = $region3
    $region8: #{tpu_custom_call.1} parent=1 // loop_exit
      _
    %545 = vsyncpa [#allocation3], 1
    %s546 = scalar_lea.sflag [#allocation3], 1
    %547 = vsyncpa %s546, 1
    %548 = vsyncpa [#allocation4], 1
    %s549 = scalar_lea.sflag [#allocation4], 1
    %550 = vsyncpa %s549, 1

</llo_original>
